<compile_context>
chip_gen: v7x
topology: tpu7x:2x2x1
jax: 0.10.0
libtpu: 0.0.40
codegen_flags: <defaults>
</compile_context>

<pallas_src>
import jax
import jax.numpy as jnp
from jax.experimental import pallas as pl
from jax.experimental.pallas import tpu as pltpu

M_PAD = 8     # sublane-aligned batch rows
K_PAD = 128   # lane-dense contraction dim (real K=10, +1 bias row)
N_PAD = 128   # lane-dense output dim


def _mymodule_kernel(x_ref, p_ref, o_ref):
    # x_ref: (M_PAD, K_PAD) padded input rows (with a ones-column at BIAS_ROW)
    # p_ref: (K_PAD, N_PAD) W_eff in rows [0:K), b_eff in row BIAS_ROW
    # Single MXU push; bias comes along for free via the augmented column.
    o_ref[...] = jnp.dot(
        x_ref[...], p_ref[...], preferred_element_type=jnp.float32
    ).astype(o_ref.dtype)


def make_mymodule_forward(w0, b0, w1, b1):
    """Build the forward fn. w0/w1: (out,in) torch-style; b0/b1: (out,)."""
    w0 = jnp.asarray(w0, jnp.float32)
    w1 = jnp.asarray(w1, jnp.float32)
    b0 = jnp.asarray(b0, jnp.float32).reshape(1, -1)
    b1 = jnp.asarray(b1, jnp.float32).reshape(1, -1)

    # ---- algebraic fold of the two module iterations (done ONCE, eagerly) ----
    wt0 = w0.T                       # (K, N)
    wt_sum = (w0 + w1).T             # (K, N)
    w_eff = 2.0 * (wt0 @ wt_sum)                 # (K, N)
    b_eff = 2.0 * (b0 @ wt_sum) + b0 + b1        # (1, N)

    K, N = w_eff.shape
    bias_row = K                                  # spare row inside K_PAD

    # ---- pack W_eff + b_eff into ONE (128,128) lane-dense buffer ----
    params = jnp.zeros((K_PAD, N_PAD), jnp.float32)
    params = params.at[:K, :N].set(w_eff)
    params = params.at[bias_row, :N].set(b_eff[0])
    params = jax.device_put(params)               # closure constant of forward

    vmem = pl.BlockSpec(memory_space=pltpu.MemorySpace.VMEM)
    call = pl.pallas_call(
        _mymodule_kernel,
        out_shape=jax.ShapeDtypeStruct((M_PAD, N_PAD), jnp.float32),
        in_specs=[vmem, vmem],
        out_specs=vmem,
    )

    @jax.jit
    def forward(x):
        M, Kx = x.shape
        x_pad = jnp.zeros((M_PAD, K_PAD), jnp.float32)
        x_pad = x_pad.at[:M, :Kx].set(x)
        x_pad = x_pad.at[:, bias_row].set(1.0)    # augmented ones column
        out_pad = call(x_pad, params)
        return out_pad[:M, :N]

    return forward


def _reference(x, w0, b0, w1, b1):
    """Sequential reference matching the PyTorch module exactly (torch convention)."""
    h = (x @ w0.T + b0) + (x @ w0.T + b0)
    return (h @ w0.T + b0) + (h @ w1.T + b1)


if __name__ == "__main__":
    key = jax.random.PRNGKey(0)
    kx, k0w, k0b, k1w, k1b = jax.random.split(key, 5)

    M, D = 3, 10  # matches torch.randn(3, 10) and nn.Linear(10, 10)

    x = jax.random.normal(kx, (M, D), dtype=jnp.float32)

    # Deterministic parameter init (uniform like nn.Linear default, bound=1/sqrt(10)).
    # Stored in torch convention: weight (out_features, in_features), bias (out_features,).
    bound = 1.0 / jnp.sqrt(jnp.float32(D))
    w0 = jax.random.uniform(k0w, (D, D), jnp.float32, -bound, bound)
    b0 = jax.random.uniform(k0b, (D,), jnp.float32, -bound, bound)
    w1 = jax.random.uniform(k1w, (D, D), jnp.float32, -bound, bound)
    b1 = jax.random.uniform(k1b, (D,), jnp.float32, -bound, bound)

    forward = make_mymodule_forward(w0, b0, w1, b1)   # fold/pack once (module init)

    out = forward(x)
    out = jax.block_until_ready(out)

    ref = _reference(x, w0, b0, w1, b1)
    assert out.shape == (M, D)
    assert jnp.allclose(out, ref, atol=1e-4, rtol=1e-4), "mismatch vs reference"

    print("KERNEL_OK")
</pallas_src>

<mosaic_0001>
module attributes {stable_mosaic.version = 11 : i64} {
  func.func @_mymodule_kernel(%arg0: memref<8x128xf32, #tpu.memory_space<vmem>>, %arg1: memref<128x128xf32, #tpu.memory_space<vmem>>, %arg2: memref<8x128xf32, #tpu.memory_space<vmem>>) attributes {dimension_semantics = [], scalar_prefetch = 0 : i64, scratch_operands = 0 : i64, tpu.core_type = #tpu.core_type<tc>} {
    %c0 = arith.constant 0 : index
    %c0_0 = arith.constant 0 : index
    %0 = vector.load %arg0[%c0, %c0_0] : memref<8x128xf32, #tpu.memory_space<vmem>>, vector<8x128xf32>
    %c0_1 = arith.constant 0 : index
    %c0_2 = arith.constant 0 : index
    %1 = vector.load %arg1[%c0_1, %c0_2] : memref<128x128xf32, #tpu.memory_space<vmem>>, vector<128x128xf32>
    %cst = arith.constant dense<0.000000e+00> : vector<8x128xf32>
    %2 = tpu.matmul %0, %1, %cst {dimension_numbers = #tpu.dot_dimension_numbers<[1], [0], [0], [1], [0, 0, 1, 1], [], []>} : vector<8x128xf32>, vector<128x128xf32>, vector<8x128xf32> -> vector<8x128xf32>
    %c0_3 = arith.constant 0 : index
    %c0_4 = arith.constant 0 : index
    %3 = vector.load %arg2[%c0_3, %c0_4] : memref<8x128xf32, #tpu.memory_space<vmem>>, vector<8x128xf32>
    tpu.vector_store %arg2[%c0_3, %c0_4], %2 {strides = array<i32>} : memref<8x128xf32, #tpu.memory_space<vmem>>, vector<8x128xf32>,
    return
  }
}

</mosaic_0001>

<llo_original>
// kernel: forward.1
$region0: #{forward.1}
  #allocation0 [shape = 'u32[]', space=smem, size = 0x4, offset = 0x4, fixed_abs, tag = 'smem constant byte address 0x4 - core index']
  #allocation1 [shape = 'u32[144,128]{1,0:T(1,128)}', space=vmem, size = 0x12000, scoped, tag = 'internal scratch']
  %s0 = inlined_call_operand.vmem [shape: f32[8,128], index: 0, kind: input, shape index: {}]
  %s1 = inlined_call_operand.hbm [shape: f32[128,128], index: 1, kind: input, shape index: {}]
  %s2 = inlined_call_operand.vmem [shape: f32[8,128], index: 2, kind: output, shape index: {}]
  %s3 = sld [smem:[#allocation0]]
  $region22: #{forward.1} parent=0
    _
  %s5 = ssub.s32 1, %s3
  %s6 = scalar_select 0, %s5, %s3
  $region1: #{forward.1} parent=0
    #allocation2 [shape = 'u8[65536]{0}', space=vmem, size = 0x10000, scoped, tag = 'input window, operand 1, single buffered']
    #allocation3 [shape = 's32[1]{0}', space=sflag, size = 0x4, scoped, tag = 'scoped memory for forward.1']
    %7 = vsyncpa [#allocation3], 0
    // Predicated region
    $region2: #{forward.1} parent=1 // pred_check
      _
    $region3: #{forward.1} parent=1 // pred_check_branch
      %9 = sbr.rel (0) target = $region5
    $region4: #{forward.1} parent=1 // pred_region
      _
    $region5: #{forward.1} parent=1 // pred_fallthru
      _
    // Predicated region
    $region6: #{forward.1} parent=1 // pred_check
      _
    $region7: #{forward.1} parent=1 // pred_check_branch
      %11 = sbr.rel (0) target = $region9
    $region8: #{forward.1} parent=1 // pred_region
      %s13 = ssub.s32 2048, 2048
      %14 = vsyncadd [#allocation3], %s13
      %s15 = sshll.u32 [#allocation2], 4
      %s16 = int_to_ptr.vmem [resolvable:$true] %s15
      %21 = dma.hbm_to_vmem [thread:$0]  %s1, 2048, %s16, [#allocation3], 128, 128, 8
    $region9: #{forward.1} parent=1 // pred_fallthru
      _
    // Predicated region
    $region10: #{forward.1} parent=1 // pred_check
      _
    $region11: #{forward.1} parent=1 // pred_check_branch
      %23 = sbr.rel (0) target = $region13
    $region12: #{forward.1} parent=1 // pred_region
      %24 = dma.done [#allocation3], 2048
    $region13: #{forward.1} parent=1 // pred_fallthru
      _
    %v25 = vld [vmem:[%s0] sm:$0xff]
    %v26 = vld [vmem:[#allocation2] sm:$0xff]
    %v27 = vld [vmem:[#allocation2 + $0x8] sm:$0xff]
    %v28 = vld [vmem:[#allocation2 + $0x10] sm:$0xff]
    %v29 = vld [vmem:[#allocation2 + $0x18] sm:$0xff]
    %v30 = vld [vmem:[#allocation2 + $0x20] sm:$0xff]
    %v31 = vld [vmem:[#allocation2 + $0x28] sm:$0xff]
    %v32 = vld [vmem:[#allocation2 + $0x30] sm:$0xff]
    %v33 = vld [vmem:[#allocation2 + $0x38] sm:$0xff]
    %v34 = vld [vmem:[#allocation2 + $0x40] sm:$0xff]
    %v35 = vld [vmem:[#allocation2 + $0x48] sm:$0xff]
    %v36 = vld [vmem:[#allocation2 + $0x50] sm:$0xff]
    %v37 = vld [vmem:[#allocation2 + $0x58] sm:$0xff]
    %v38 = vld [vmem:[#allocation2 + $0x60] sm:$0xff]
    %v39 = vld [vmem:[#allocation2 + $0x68] sm:$0xff]
    %v40 = vld [vmem:[#allocation2 + $0x70] sm:$0xff]
    %v41 = vld [vmem:[#allocation2 + $0x78] sm:$0xff]
    %42 = vmatprep.subr.mxu0 0.0
    %43 = vmatpush1.msra.mxu0 %v26
    %44 = vmatprep.subr.mxu0 0.0
    %45 = vmatpush1.msra.mxu0 %v27
    %46 = vmatprep.subr.mxu0 0.0
    %47 = vmatpush1.msra.mxu0 %v28
    %48 = vmatprep.subr.mxu0 0.0
    %49 = vmatpush1.msra.mxu0 %v29
    %50 = vmatprep.subr.mxu0 0.0
    %51 = vmatpush1.msra.mxu0 %v30
    %52 = vmatprep.subr.mxu0 0.0
    %53 = vmatpush1.msra.mxu0 %v31
    %54 = vmatprep.subr.mxu0 0.0
    %55 = vmatpush1.msra.mxu0 %v32
    %56 = vmatprep.subr.mxu0 0.0
    %57 = vmatpush1.msra.mxu0 %v33
    %58 = vmatprep.subr.mxu0 0.0
    %59 = vmatpush1.msra.mxu0 %v34
    %60 = vmatprep.subr.mxu0 0.0
    %61 = vmatpush1.msra.mxu0 %v35
    %62 = vmatprep.subr.mxu0 0.0
    %63 = vmatpush1.msra.mxu0 %v36
    %64 = vmatprep.subr.mxu0 0.0
    %65 = vmatpush1.msra.mxu0 %v37
    %66 = vmatprep.subr.mxu0 0.0
    %67 = vmatpush1.msra.mxu0 %v38
    %68 = vmatprep.subr.mxu0 0.0
    %69 = vmatpush1.msra.mxu0 %v39
    %70 = vmatprep.subr.mxu0 0.0
    %71 = vmatpush1.msra.mxu0 %v40
    %72 = vmatprep.subr.mxu0 0.0
    %73 = vmatpush1.msra.mxu0 %v41
    %74 = vmatprep.subr.mxu0 0.0
    %75 = vmatpush1.msra.mxu0 0.0
    %76 = vmatprep.subr.mxu0 0.0
    %77 = vmatpush1.msra.mxu0 0.0
    %78 = vmatprep.subr.mxu0 0.0
    %79 = vmatpush1.msra.mxu0 0.0
    %80 = vmatprep.subr.mxu0 0.0
    %81 = vmatpush1.msra.mxu0 0.0
    %82 = vmatprep.subr.mxu0 0.0
    %83 = vmatpush1.msra.mxu0 0.0
    %84 = vmatprep.subr.mxu0 0.0
    %85 = vmatpush1.msra.mxu0 0.0
    %86 = vmatprep.subr.mxu0 0.0
    %87 = vmatpush1.msra.mxu0 0.0
    %88 = vmatprep.subr.mxu0 0.0
    %89 = vmatpush1.msra.mxu0 0.0
    %90 = vmatprep.subr.mxu0 0.0
    %91 = vmatpush1.msra.mxu0 0.0
    %92 = vmatprep.subr.mxu0 0.0
    %93 = vmatpush1.msra.mxu0 0.0
    %94 = vmatprep.subr.mxu0 0.0
    %95 = vmatpush1.msra.mxu0 0.0
    %96 = vmatprep.subr.mxu0 0.0
    %97 = vmatpush1.msra.mxu0 0.0
    %98 = vmatprep.subr.mxu0 0.0
    %99 = vmatpush1.msra.mxu0 0.0
    %100 = vmatprep.subr.mxu0 0.0
    %101 = vmatpush1.msra.mxu0 0.0
    %102 = vmatprep.subr.mxu0 0.0
    %103 = vmatpush1.msra.mxu0 0.0
    %104 = vmatprep.subr.mxu0 0.0
    %105 = vmatpush1.msra.mxu0 0.0
    %106 = vmatprep.mubr.f32.mxu0 0.0
    %107 = vmatmul.mubr.f32.gmra.mrb[0].mxu0 %v25
    %v108 = vpop.f32.mrb[0].mxu0
    %v109 = vadd.f32 0.0, %v108
    %v110 = vpop.f32.mrb[0].mxu0
    %111 = vdwg.mxu0
    %112 = vst [vmem:[%s2] sm:$0xff] %v109
    // Predicated region
    $region14: #{forward.1} parent=1 // pred_check
      _
    $region15: #{forward.1} parent=1 // pred_check_branch
      %114 = sbr.rel (0) target = $region17
    $region16: #{forward.1} parent=1 // pred_region
      _
    $region17: #{forward.1} parent=1 // pred_fallthru
      _
    // Predicated region
    $region18: #{forward.1} parent=1 // pred_check
      _
    $region19: #{forward.1} parent=1 // pred_check_branch
      %116 = sbr.rel (0) target = $region21
    $region20: #{forward.1} parent=1 // pred_region
      _
    $region21: #{forward.1} parent=1 // pred_fallthru
      _
    %117 = vsyncpa [#allocation3], 1

</llo_original>
